<compile_context>
chip_gen: v6e
topology: v6e:2x2x1
jax: 0.10.0
libtpu: 0.0.40
codegen_flags: <defaults>
</compile_context>

<pallas_src>
import jax
import jax.numpy as jnp
from jax.experimental import pallas as pl
from jax.experimental.pallas import tpu as pltpu

LANE = 128     # lane (last-dim) granularity
SUBLANE = 8    # sublane (second-to-last dim) granularity


def _round_up(x, m):
    return (x + m - 1) // m * m


def bernoulli_mlp_kernel(z_ref, w1_ref, b1_ref, w2_ref, b2_ref, o_ref):
    # Cast activations to bf16 in-kernel (VPU); f32 never hits HBM twice.
    z = z_ref[...].astype(w1_ref.dtype)
    # fc1: bf16 x bf16 -> f32 accumulate on the MXU.
    h = jnp.dot(z, w1_ref[...], preferred_element_type=jnp.float32)
    h = jnp.tanh(h + b1_ref[...])                      # f32 elementwise (EUP tanh)
    # fc2: back to bf16 for the MXU, accumulate in f32.
    y = jnp.dot(h.astype(w2_ref.dtype), w2_ref[...],
                preferred_element_type=jnp.float32)
    # Single EUP logistic; store bf16 (halves writeback on an HBM-bound kernel).
    o_ref[...] = jax.nn.sigmoid(y + b2_ref[...]).astype(o_ref.dtype)


def prepare_params(w1, b1, w2, b2, compute_dtype=jnp.bfloat16):
    """One-time param prep (call at init, NOT per forward).

    PyTorch nn.Linear layout in: w1 (hidden, in), b1 (hidden,),
    w2 (out, hidden), b2 (out,).  Returns transposed bf16 weights with the
    hidden dim padded to 128 lanes: w1 (d_in, hid_p), w2 (hid_p, d_out),
    and f32 biases (1, hid_p) / (1, d_out).
    """
    hidden, d_in = w1.shape
    d_out = w2.shape[0]
    hid_p = _round_up(hidden, LANE)

    w1_t = jnp.zeros((d_in, hid_p), compute_dtype)
    w1_t = w1_t.at[:, :hidden].set(w1.T.astype(compute_dtype))
    w2_t = jnp.zeros((hid_p, d_out), compute_dtype)
    w2_t = w2_t.at[:hidden, :].set(w2.T.astype(compute_dtype))
    b1_p = jnp.zeros((1, hid_p), jnp.float32).at[0, :hidden].set(b1.astype(jnp.float32))
    b2_p = b2.astype(jnp.float32).reshape(1, d_out)
    return (w1_t, b1_p, w2_t, b2_p), d_out


def bernoulli_mlp(z, params, output_size, *, tile_b_max=2048):
    """z: (B, input_size) f32. Returns (B, output_size) bf16 sigmoid outputs."""
    w1_t, b1_p, w2_t, b2_p = params
    B, d_in = z.shape
    hid_p = w1_t.shape[1]
    d_out = w2_t.shape[1]
    assert d_out == output_size

    # Adaptive batch tiling: n_tiles grid steps, tile ~= B / n_tiles rounded to
    # 8 sublanes — avoids padding a whole extra tile for awkward batch sizes.
    # tile_b_max=2048 keeps double-buffered tiles well inside v5e's 16 MiB
    # scoped VMEM; raise only together with vmem_limit_bytes.
    n_tiles = max(1, pl.cdiv(B, tile_b_max))
    tile_b = _round_up(pl.cdiv(B, n_tiles), SUBLANE)
    B_p = tile_b * n_tiles

    # Only a (small) batch pad when B isn't a tile multiple; no feature pad,
    # no dtype cast -> z goes into the kernel straight from HBM as f32.
    z_in = z if B_p == B else jnp.pad(z, ((0, B_p - B), (0, 0)))

    bytes_per = jnp.dtype
    cost = pl.CostEstimate(
        flops=2 * B_p * (d_in * hid_p + hid_p * d_out),
        transcendentals=B_p * (hid_p + d_out),
        bytes_accessed=(B_p * d_in * 4                      # z in (f32)
                        + B_p * d_out * 2                   # out (bf16)
                        + w1_t.size * 2 + w2_t.size * 2     # resident weights
                        + b1_p.size * 4 + b2_p.size * 4),
    )

    out = pl.pallas_call(
        bernoulli_mlp_kernel,
        out_shape=jax.ShapeDtypeStruct((B_p, d_out), jnp.bfloat16),
        grid_spec=pltpu.PrefetchScalarGridSpec(
            num_scalar_prefetch=0,
            grid=(n_tiles,),
            in_specs=[
                pl.BlockSpec((tile_b, d_in), lambda i: (i, 0)),    # z tile (pipelined)
                pl.BlockSpec((d_in, hid_p), lambda i: (0, 0)),     # w1 resident
                pl.BlockSpec((1, hid_p), lambda i: (0, 0)),        # b1 resident
                pl.BlockSpec((hid_p, d_out), lambda i: (0, 0)),    # w2 resident
                pl.BlockSpec((1, d_out), lambda i: (0, 0)),        # b2 resident
            ],
            # True d_out lanes (full-extent last dim): masked stores, but no
            # padded slab + no post-kernel crop pass.
            out_specs=pl.BlockSpec((tile_b, d_out), lambda i: (i, 0)),
        ),
        compiler_params=pltpu.CompilerParams(
            # Shard batch tiles across TensorCores on v7x; no-op on v5e/v6e.
            dimension_semantics=("parallel",),
        ),
        cost_estimate=cost,
    )(z_in, w1_t, b1_p, w2_t, b2_p)

    return out if B_p == B else out[:B]


def torch_linear_init(key, out_features, in_features):
    """Deterministic init matching nn.Linear default: U(-1/sqrt(fan_in), +)."""
    kw, kb = jax.random.split(key)
    bound = 1.0 / jnp.sqrt(jnp.float32(in_features))
    w = jax.random.uniform(kw, (out_features, in_features), jnp.float32, -bound, bound)
    b = jax.random.uniform(kb, (out_features,), jnp.float32, -bound, bound)
    return w, b


if __name__ == "__main__":
    input_size, hidden_size, output_size = 64, 32, 48
    batch = 8

    key = jax.random.PRNGKey(0)
    k_z, k_fc1, k_fc2 = jax.random.split(key, 3)

    z = jax.random.normal(k_z, (batch, input_size), jnp.float32)
    w1, b1 = torch_linear_init(k_fc1, hidden_size, input_size)
    w2, b2 = torch_linear_init(k_fc2, output_size, hidden_size)

    # One-time weight prep (transpose + hidden-dim pad + bf16 cast).
    params, out_size = prepare_params(w1, b1, w2, b2)

    out = bernoulli_mlp(z, params, out_size)
    out = jax.block_until_ready(out)

    # Pure-f32 reference of the PyTorch forward; bf16 matmul inputs / bf16
    # output quantization bound the error.
    ref = jax.nn.sigmoid(jnp.tanh(z @ w1.T + b1) @ w2.T + b2)

    assert out.shape == (batch, output_size)
    err = float(jnp.max(jnp.abs(out.astype(jnp.float32) - ref)))
    assert err < 2e-2, err

    print("KERNEL_OK")
</pallas_src>

<mosaic_0001>
module attributes {stable_mosaic.version = 11 : i64} {
  func.func @bernoulli_mlp_kernel(%arg0: i32, %arg1: memref<8x64xf32, #tpu.memory_space<vmem>>, %arg2: memref<64x128xbf16, #tpu.memory_space<vmem>>, %arg3: memref<1x128xf32, #tpu.memory_space<vmem>>, %arg4: memref<128x48xbf16, #tpu.memory_space<vmem>>, %arg5: memref<1x48xf32, #tpu.memory_space<vmem>>, %arg6: memref<8x48xbf16, #tpu.memory_space<vmem>>) attributes {dimension_semantics = [#tpu.dimension_semantics<parallel>], iteration_bounds = array<i64: 1>, scalar_prefetch = 0 : i64, scratch_operands = 0 : i64, tpu.core_type = #tpu.core_type<tc>, window_params = [{transform_indices = @transform_0, window_bounds = array<i64: 8, 64>}, {pipeline_mode = #tpu.pipeline_mode<synchronous>, transform_indices = @transform_1, window_bounds = array<i64: 64, 128>}, {pipeline_mode = #tpu.pipeline_mode<synchronous>, transform_indices = @transform_2, window_bounds = array<i64: 1, 128>}, {pipeline_mode = #tpu.pipeline_mode<synchronous>, transform_indices = @transform_3, window_bounds = array<i64: 128, 48>}, {pipeline_mode = #tpu.pipeline_mode<synchronous>, transform_indices = @transform_4, window_bounds = array<i64: 1, 48>}, {transform_indices = @transform_5, window_bounds = array<i64: 8, 48>}]} {
    %c0 = arith.constant 0 : index
    %c0_0 = arith.constant 0 : index
    %0 = vector.load %arg1[%c0, %c0_0] : memref<8x64xf32, #tpu.memory_space<vmem>>, vector<8x64xf32>
    %1 = arith.truncf %0 : vector<8x64xf32> to vector<8x64xbf16>
    %c0_1 = arith.constant 0 : index
    %c0_2 = arith.constant 0 : index
    %2 = vector.load %arg2[%c0_1, %c0_2] : memref<64x128xbf16, #tpu.memory_space<vmem>>, vector<64x128xbf16>
    %cst = arith.constant dense<0.000000e+00> : vector<8x128xf32>
    %3 = tpu.matmul %1, %2, %cst {dimension_numbers = #tpu.dot_dimension_numbers<[1], [0], [0], [1], [0, 0, 1, 1], [], []>} : vector<8x64xbf16>, vector<64x128xbf16>, vector<8x128xf32> -> vector<8x128xf32>
    %c0_3 = arith.constant 0 : index
    %c0_4 = arith.constant 0 : index
    %4 = vector.load %arg3[%c0_3, %c0_4] : memref<1x128xf32, #tpu.memory_space<vmem>>, vector<1x128xf32>
    %5 = vector.broadcast %4 : vector<1x128xf32> to vector<8x128xf32>
    %6 = arith.addf %3, %5 : vector<8x128xf32>
    %7 = math.tanh %6 : vector<8x128xf32>
    %8 = arith.truncf %7 : vector<8x128xf32> to vector<8x128xbf16>
    %c0_5 = arith.constant 0 : index
    %c0_6 = arith.constant 0 : index
    %9 = vector.load %arg4[%c0_5, %c0_6] : memref<128x48xbf16, #tpu.memory_space<vmem>>, vector<128x48xbf16>
    %cst_7 = arith.constant dense<0.000000e+00> : vector<8x48xf32>
    %10 = tpu.matmul %8, %9, %cst_7 {dimension_numbers = #tpu.dot_dimension_numbers<[1], [0], [0], [1], [0, 0, 1, 1], [], []>} : vector<8x128xbf16>, vector<128x48xbf16>, vector<8x48xf32> -> vector<8x48xf32>
    %c0_8 = arith.constant 0 : index
    %c0_9 = arith.constant 0 : index
    %11 = vector.load %arg5[%c0_8, %c0_9] : memref<1x48xf32, #tpu.memory_space<vmem>>, vector<1x48xf32>
    %12 = vector.broadcast %11 : vector<1x48xf32> to vector<8x48xf32>
    %13 = arith.addf %10, %12 : vector<8x48xf32>
    %14 = arith.negf %13 : vector<8x48xf32>
    %15 = math.exp %14 : vector<8x48xf32>
    %cst_10 = arith.constant 1.000000e+00 : f32
    %16 = vector.broadcast %cst_10 : f32 to vector<8x48xf32>
    %17 = arith.addf %16, %15 : vector<8x48xf32>
    %18 = arith.divf %16, %17 : vector<8x48xf32>
    %19 = arith.truncf %18 : vector<8x48xf32> to vector<8x48xbf16>
    %c0_11 = arith.constant 0 : index
    %c0_12 = arith.constant 0 : index
    %20 = vector.load %arg6[%c0_11, %c0_12] : memref<8x48xbf16, #tpu.memory_space<vmem>>, vector<8x48xbf16>
    tpu.vector_store %arg6[%c0_11, %c0_12], %19 {strides = array<i32>} : memref<8x48xbf16, #tpu.memory_space<vmem>>, vector<8x48xbf16>,
    return
  }
  func.func @transform_0(%arg0: i32) -> (i32, i32) {
    %c0_i32 = arith.constant 0 : i32
    %c0_i32_0 = arith.constant 0 : i32
    return %arg0, %c0_i32 : i32, i32
  }
  func.func @transform_1(%arg0: i32) -> (i32, i32) {
    %c0_i32 = arith.constant 0 : i32
    %c0_i32_0 = arith.constant 0 : i32
    %c0_i32_1 = arith.constant 0 : i32
    return %c0_i32, %c0_i32_0 : i32, i32
  }
  func.func @transform_2(%arg0: i32) -> (i32, i32) {
    %c0_i32 = arith.constant 0 : i32
    %c0_i32_0 = arith.constant 0 : i32
    %c0_i32_1 = arith.constant 0 : i32
    return %c0_i32, %c0_i32_0 : i32, i32
  }
  func.func @transform_3(%arg0: i32) -> (i32, i32) {
    %c0_i32 = arith.constant 0 : i32
    %c0_i32_0 = arith.constant 0 : i32
    %c0_i32_1 = arith.constant 0 : i32
    return %c0_i32, %c0_i32_0 : i32, i32
  }
  func.func @transform_4(%arg0: i32) -> (i32, i32) {
    %c0_i32 = arith.constant 0 : i32
    %c0_i32_0 = arith.constant 0 : i32
    %c0_i32_1 = arith.constant 0 : i32
    return %c0_i32, %c0_i32_0 : i32, i32
  }
  func.func @transform_5(%arg0: i32) -> (i32, i32) {
    %c0_i32 = arith.constant 0 : i32
    %c0_i32_0 = arith.constant 0 : i32
    return %arg0, %c0_i32 : i32, i32
  }
}

</mosaic_0001>

<llo_original>
// kernel: tpu_custom_call.1
$region0: #{tpu_custom_call.1}
  #allocation0 [shape = 'u32[]', space=smem, size = 0x4, offset = 0x4, fixed_abs, tag = 'smem constant byte address 0x4 - core index']
  #allocation1 [shape = 'u32[144,128]{1,0:T(1,128)}', space=vmem, size = 0x12000, scoped, tag = 'internal scratch']
  %s0 = inlined_call_operand.vmem [shape: f32[8,64], index: 0, kind: input, shape index: {}]
  %s1 = inlined_call_operand.vmem [shape: bf16[64,128], index: 1, kind: input, shape index: {}]
  %s2 = inlined_call_operand.vmem [shape: f32[1,128], index: 2, kind: input, shape index: {}]
  %s3 = inlined_call_operand.vmem [shape: bf16[128,48], index: 3, kind: input, shape index: {}]
  %s4 = inlined_call_operand.vmem [shape: f32[1,48], index: 4, kind: input, shape index: {}]
  %s5 = inlined_call_operand.hbm [shape: bf16[8,48], index: 5, kind: output, shape index: {}]
  %s6 = sld [smem:[#allocation0]]
  $region30: #{tpu_custom_call.1} parent=0
    _
  %s8 = ssub.s32 1, %s6
  %s9 = scalar_select 0, %s8, %s6
  $region1: #{tpu_custom_call.1} parent=0
    #allocation2 [shape = 'u8[2048]{0}', space=vmem, size = 0x800, scoped, tag = 'output window, operand 0, single buffered']
    #allocation3 [shape = 's32[1]{0}', space=sflag, size = 0x4, scoped, tag = 'scoped memory for tpu_custom_call.1']
    %10 = vsyncpa [#allocation3], 0
    // Predicated region
    $region2: #{tpu_custom_call.1} parent=1 // pred_check
      _
    $region3: #{tpu_custom_call.1} parent=1 // pred_check_branch
      %12 = sbr.rel (0) target = $region5
    $region4: #{tpu_custom_call.1} parent=1 // pred_region
      _
    $region5: #{tpu_custom_call.1} parent=1 // pred_fallthru
      _
    // Predicated region
    $region6: #{tpu_custom_call.1} parent=1 // pred_check
      _
    $region7: #{tpu_custom_call.1} parent=1 // pred_check_branch
      %14 = sbr.rel (0) target = $region9
    $region8: #{tpu_custom_call.1} parent=1 // pred_region
      _
    $region9: #{tpu_custom_call.1} parent=1 // pred_fallthru
      _
    // Predicated region
    $region10: #{tpu_custom_call.1} parent=1 // pred_check
      _
    $region11: #{tpu_custom_call.1} parent=1 // pred_check_branch
      %16 = sbr.rel (0) target = $region13
    $region12: #{tpu_custom_call.1} parent=1 // pred_region
      _
    $region13: #{tpu_custom_call.1} parent=1 // pred_fallthru
      _
    // Predicated region
    $region14: #{tpu_custom_call.1} parent=1 // pred_check
      _
    $region15: #{tpu_custom_call.1} parent=1 // pred_check_branch
      %18 = sbr.rel (0) target = $region17
    $region16: #{tpu_custom_call.1} parent=1 // pred_region
      _
    $region17: #{tpu_custom_call.1} parent=1 // pred_fallthru
      _
    // Predicated region
    $region18: #{tpu_custom_call.1} parent=1 // pred_check
      _
    $region19: #{tpu_custom_call.1} parent=1 // pred_check_branch
      %20 = sbr.rel (0) target = $region21
    $region20: #{tpu_custom_call.1} parent=1 // pred_region
      _
    $region21: #{tpu_custom_call.1} parent=1 // pred_fallthru
      _
    %v22 = vld [vmem:[%s0] sm:$0xff]
    %v23 = vpack.c.bf16 %v22, %v22
    %v24 = vld [vmem:[%s1] sm:$0xf]
    %v25 = vld [vmem:[%s1 + $0x4] sm:$0xf]
    %v26 = vld [vmem:[%s1 + $0x8] sm:$0xf]
    %v27 = vld [vmem:[%s1 + $0xc] sm:$0xf]
    %v28 = vld [vmem:[%s1 + $0x10] sm:$0xf]
    %v29 = vld [vmem:[%s1 + $0x14] sm:$0xf]
    %v30 = vld [vmem:[%s1 + $0x18] sm:$0xf]
    %v31 = vld [vmem:[%s1 + $0x1c] sm:$0xf]
    %v32 = vld [vmem:[%s2] sm:$0x1]
    %v34 = vlaneseq
    %v35 = vshrl.u32 %v34, 7
    %v36 = vsub.s32 0, %v35
    %v37 = vrot.slane %v32, %v36
    %v47 = vunpack.c.l.b16 %v24
    %v48 = vunpack.c.l.b16 %v25
    %v49 = vunpack.c.l.b16 %v26
    %v50 = vunpack.c.l.b16 %v27
    %v51 = vunpack.c.l.b16 %v28
    %v52 = vunpack.c.l.b16 %v29
    %v53 = vunpack.c.l.b16 %v30
    %v54 = vunpack.c.l.b16 %v31
    %v55 = vpack.c.b16 %v48, %v47
    %v56 = vpack.c.b16 %v50, %v49
    %v57 = vpack.c.b16 %v52, %v51
    %v58 = vpack.c.b16 %v54, %v53
    %vm63 = vcmask 523264
    %v65 = vsel %vm63, %v23, 0
    %67 = vmatprep.subr.bf16.mxu0 0
    %68 = vmatpush1.bf16.msra.mxu0 0
    %69 = vmatprep.subr.bf16.mxu0 0
    %70 = vmatpush1.bf16.msra.mxu0 0
    %71 = vmatprep.subr.bf16.mxu0 0
    %72 = vmatpush1.bf16.msra.mxu0 0
    %73 = vmatprep.subr.bf16.mxu0 0
    %74 = vmatpush1.bf16.msra.mxu0 0
    %75 = vmatprep.subr.bf16.mxu0 0
    %76 = vmatpush1.bf16.msra.mxu0 %v58
    %77 = vmatprep.subr.bf16.mxu0 0
    %78 = vmatpush1.bf16.msra.mxu0 %v57
    %79 = vmatprep.subr.bf16.mxu0 0
    %80 = vmatpush1.bf16.msra.mxu0 %v56
    %81 = vmatprep.subr.bf16.mxu0 0
    %82 = vmatpush1.bf16.msra.mxu0 %v55
    %83 = vmatprep.subr.bf16.mxu0 0
    %84 = vmatpush2.bf16.msra.mxu0 0
    %85 = vmatprep.subr.bf16.mxu0 0
    %86 = vmatpush2.bf16.msra.mxu0 0
    %87 = vmatprep.subr.bf16.mxu0 0
    %88 = vmatpush2.bf16.msra.mxu0 0
    %89 = vmatprep.subr.bf16.mxu0 0
    %90 = vmatpush2.bf16.msra.mxu0 0
    %91 = vmatprep.subr.bf16.mxu0 0
    %92 = vmatpush2.bf16.msra.mxu0 0
    %93 = vmatprep.subr.bf16.mxu0 0
    %94 = vmatpush2.bf16.msra.mxu0 0
    %95 = vmatprep.subr.bf16.mxu0 0
    %96 = vmatpush2.bf16.msra.mxu0 0
    %97 = vmatprep.subr.bf16.mxu0 0
    %98 = vmatpush2.bf16.msra.mxu0 0
    %99 = vmatprep.mubr.bf16.mxu0 0
    %100 = vmatmul.mubr.bf16.gmra.mxu0 %v65
    %v101 = vpop.f32.mrf.mxu0
    %v102 = vadd.f32 %v37, %v101
    %v103 = vpop.f32.mrf.mxu0
    %v104 = vpop.f32.mrf.mxu0
    %v105 = vpop.f32.mrf.mxu0
    %106 = vdwg.mxu0
    %v107 = vtanh.pop %v102
    %v108 = vpack.c.bf16 %v107, %v107
    %v109 = vld [vmem:[%s3] sm:$0xf]
    %v110 = vld [vmem:[%s3 + $0x4] sm:$0xf]
    %v111 = vld [vmem:[%s3 + $0x8] sm:$0xf]
    %v112 = vld [vmem:[%s3 + $0xc] sm:$0xf]
    %v113 = vld [vmem:[%s3 + $0x10] sm:$0xf]
    %v114 = vld [vmem:[%s3 + $0x14] sm:$0xf]
    %v115 = vld [vmem:[%s3 + $0x18] sm:$0xf]
    %v116 = vld [vmem:[%s3 + $0x1c] sm:$0xf]
    %v117 = vld [vmem:[%s3 + $0x20] sm:$0xf]
    %v118 = vld [vmem:[%s3 + $0x24] sm:$0xf]
    %v119 = vld [vmem:[%s3 + $0x28] sm:$0xf]
    %v120 = vld [vmem:[%s3 + $0x2c] sm:$0xf]
    %v121 = vld [vmem:[%s3 + $0x30] sm:$0xf]
    %v122 = vld [vmem:[%s3 + $0x34] sm:$0xf]
    %v123 = vld [vmem:[%s3 + $0x38] sm:$0xf]
    %v124 = vld [vmem:[%s3 + $0x3c] sm:$0xf]
    %v125 = vld [vmem:[%s4] sm:$0x1]
    %v127 = vlaneseq
    %v128 = vshrl.u32 %v127, 7
    %v129 = vsub.s32 0, %v128
    %v130 = vrot.slane %v125, %v129
    %v148 = vunpack.c.l.b16 %v109
    %v149 = vunpack.c.l.b16 %v110
    %v150 = vunpack.c.l.b16 %v111
    %v151 = vunpack.c.l.b16 %v112
    %v152 = vunpack.c.l.b16 %v113
    %v153 = vunpack.c.l.b16 %v114
    %v154 = vunpack.c.l.b16 %v115
    %v155 = vunpack.c.l.b16 %v116
    %v156 = vunpack.c.l.b16 %v117
    %v157 = vunpack.c.l.b16 %v118
    %v158 = vunpack.c.l.b16 %v119
    %v159 = vunpack.c.l.b16 %v120
    %v160 = vunpack.c.l.b16 %v121
    %v161 = vunpack.c.l.b16 %v122
    %v162 = vunpack.c.l.b16 %v123
    %v163 = vunpack.c.l.b16 %v124
    %v164 = vpack.c.b16 %v149, %v148
    %v165 = vpack.c.b16 %v151, %v150
    %v166 = vpack.c.b16 %v153, %v152
    %v167 = vpack.c.b16 %v155, %v154
    %v168 = vpack.c.b16 %v157, %v156
    %v169 = vpack.c.b16 %v159, %v158
    %v170 = vpack.c.b16 %v161, %v160
    %v171 = vpack.c.b16 %v163, %v162
    %180 = vmatprep.subr.bf16.mxu0 0
    %181 = vmatpush1.bf16.msra.mxu0 %v171
    %182 = vmatprep.subr.bf16.mxu0 0
    %183 = vmatpush1.bf16.msra.mxu0 %v170
    %184 = vmatprep.subr.bf16.mxu0 0
    %185 = vmatpush1.bf16.msra.mxu0 %v169
    %186 = vmatprep.subr.bf16.mxu0 0
    %187 = vmatpush1.bf16.msra.mxu0 %v168
    %188 = vmatprep.subr.bf16.mxu0 0
    %189 = vmatpush1.bf16.msra.mxu0 %v167
    %190 = vmatprep.subr.bf16.mxu0 0
    %191 = vmatpush1.bf16.msra.mxu0 %v166
    %192 = vmatprep.subr.bf16.mxu0 0
    %193 = vmatpush1.bf16.msra.mxu0 %v165
    %194 = vmatprep.subr.bf16.mxu0 0
    %195 = vmatpush1.bf16.msra.mxu0 %v164
    %196 = vmatprep.subr.bf16.mxu0 0
    %197 = vmatpush2.bf16.msra.mxu0 0
    %198 = vmatprep.subr.bf16.mxu0 0
    %199 = vmatpush2.bf16.msra.mxu0 0
    %200 = vmatprep.subr.bf16.mxu0 0
    %201 = vmatpush2.bf16.msra.mxu0 0
    %202 = vmatprep.subr.bf16.mxu0 0
    %203 = vmatpush2.bf16.msra.mxu0 0
    %204 = vmatprep.subr.bf16.mxu0 0
    %205 = vmatpush2.bf16.msra.mxu0 0
    %206 = vmatprep.subr.bf16.mxu0 0
    %207 = vmatpush2.bf16.msra.mxu0 0
    %208 = vmatprep.subr.bf16.mxu0 0
    %209 = vmatpush2.bf16.msra.mxu0 0
    %210 = vmatprep.subr.bf16.mxu0 0
    %211 = vmatpush2.bf16.msra.mxu0 0
    %212 = vmatprep.mubr.bf16.mxu0 0
    %213 = vmatmul.mubr.bf16.gmra.mxu0 %v108
    %v214 = vpop.f32.mrf.mxu0
    %v215 = vadd.f32 %v130, %v214
    %v216 = vpop.f32.mrf.mxu0
    %v217 = vpop.f32.mrf.mxu0
    %v218 = vpop.f32.mrf.mxu0
    %219 = vdwg.mxu0
    %v220 = vxor.u32 %v215, 2147483648
    %v221 = vmul.f32 %v220, 1.442695
    %v222 = vpow.pop %v221
    %v223 = vadd.f32 %v222, 1.0
    %v224 = vrcp.pop %v223
    %v225 = vmul.f32 1.0, %v224
    %v226 = vpack.c.bf16 %v225, %v225
    %vm227 = vcmask 388096
    %228 = vst.msk [vmem:[#allocation2] sm:$0xf] %vm227, %v226
    // Predicated region
    $region22: #{tpu_custom_call.1} parent=1 // pred_check
      _
    $region23: #{tpu_custom_call.1} parent=1 // pred_check_branch
      %230 = sbr.rel (0) target = $region25
    $region24: #{tpu_custom_call.1} parent=1 // pred_region
      %s232 = ssub.s32 64, 64
      %233 = vsyncadd [#allocation3], %s232
      %s235 = sshll.u32 [#allocation2], 4
      %s236 = int_to_ptr.vmem [resolvable:$true] %s235
      %238 = dma.vmem_to_hbm [thread:$0]  %s236, 64, %s5, [#allocation3]
    $region25: #{tpu_custom_call.1} parent=1 // pred_fallthru
      _
    // Predicated region
    $region26: #{tpu_custom_call.1} parent=1 // pred_check
      _
    $region27: #{tpu_custom_call.1} parent=1 // pred_check_branch
      %240 = sbr.rel (0) target = $region29
    $region28: #{tpu_custom_call.1} parent=1 // pred_region
      %241 = dma.done [#allocation3], 64
    $region29: #{tpu_custom_call.1} parent=1 // pred_fallthru
      _
    %242 = vsyncpa [#allocation3], 1

</llo_original>
